<compile_context>
chip_gen: v6e
topology: v6e:2x2x1
jax: 0.10.0
libtpu: 0.0.40
codegen_flags: <defaults>
</compile_context>

<pallas_src>
import jax
import jax.numpy as jnp
from jax.experimental import pallas as pl
from jax.experimental.pallas import tpu as pltpu


def _make_group_norm_kernel(inv_n, eps):
    """inv_n = 1 / (true elements per group); eps = GroupNorm epsilon."""

    def kernel(x_ref, gamma_ref, beta_ref, o_ref):
        # x_ref / gamma_ref / beta_ref / o_ref: (rows, cols_padded)
        # rows = N*G (one batch-group per row); cols = Cg*HW along lanes.
        x = x_ref[...].astype(jnp.float32)

        # Single-pass statistics: sum and sum-of-squares share one sweep over
        # the row; the x*x multiply co-issues on the VPU with the XLU reduce.
        s = jnp.sum(x, axis=-1, keepdims=True)           # (rows, 1)
        s2 = jnp.sum(x * x, axis=-1, keepdims=True)      # (rows, 1)
        mean = s * inv_n
        # E[x^2] - E[x]^2 can go slightly negative from cancellation; clamp.
        var = jnp.maximum(s2 * inv_n - mean * mean, 0.0)
        inv_std = jax.lax.rsqrt(var + eps)               # EUP slot (free-ish)

        # Row-wise normalize + per-element affine (gamma/beta pre-broadcast
        # to the same layout in the wrapper). Padded lanes have gamma=beta=0.
        o_ref[...] = ((x - mean) * inv_std * gamma_ref[...]
                      + beta_ref[...]).astype(o_ref.dtype)

    return kernel


def group_norm(x, gamma, beta, num_groups=2, eps=1e-5):
    """x: (N, C, H, W) float32; gamma, beta: (C,) float32."""
    N, C, H, W = x.shape
    G = num_groups
    Cg = C // G
    HW = H * W
    rows = N * G
    cols = Cg * HW

    # Lane/sublane-dense layout: one (batch, group) per row.
    x_r = x.reshape(rows, cols)

    # Pre-broadcast per-channel affine params to the (rows, cols) layout.
    gamma_b = jnp.broadcast_to(
        gamma.reshape(1, G, Cg, 1), (N, G, Cg, HW)).reshape(rows, cols)
    beta_b = jnp.broadcast_to(
        beta.reshape(1, G, Cg, 1), (N, G, Cg, HW)).reshape(rows, cols)

    # Pad lane dim to a multiple of 128 so output stores are unmasked vst.
    # (No-op for the module's shapes: cols = 3*256 = 768.)
    pad = (-cols) % 128
    if pad:
        x_r = jnp.pad(x_r, ((0, 0), (0, pad)))
        gamma_b = jnp.pad(gamma_b, ((0, 0), (0, pad)))   # zeros -> padded out = 0
        beta_b = jnp.pad(beta_b, ((0, 0), (0, pad)))
    cols_p = cols + pad

    kernel = _make_group_norm_kernel(1.0 / cols, eps)

    # Single grid step: whole problem lives in VMEM (tiny), no pipeline
    # overhead, gamma/beta DMA'd exactly once.
    out = pl.pallas_call(
        kernel,
        out_shape=jax.ShapeDtypeStruct((rows, cols_p), x.dtype),
        in_specs=[
            pl.BlockSpec(memory_space=pltpu.MemorySpace.VMEM),
            pl.BlockSpec(memory_space=pltpu.MemorySpace.VMEM),
            pl.BlockSpec(memory_space=pltpu.MemorySpace.VMEM),
        ],
        out_specs=pl.BlockSpec(memory_space=pltpu.MemorySpace.VMEM),
    )(x_r, gamma_b, beta_b)

    if pad:
        out = out[:, :cols]
    return out.reshape(N, C, H, W)


def _reference_group_norm(x, gamma, beta, num_groups=2, eps=1e-5):
    N, C, H, W = x.shape
    G = num_groups
    xr = x.reshape(N, G, -1)
    mean = xr.mean(axis=-1, keepdims=True)
    var = ((xr - mean) ** 2).mean(axis=-1, keepdims=True)
    xn = ((xr - mean) / jnp.sqrt(var + eps)).reshape(N, C, H, W)
    return xn * gamma.reshape(1, C, 1, 1) + beta.reshape(1, C, 1, 1)


if __name__ == "__main__":
    key = jax.random.PRNGKey(0)
    N, C, H, W = 2, 6, 16, 16  # nn.GroupNorm(2, 6) => C must be 6

    x = jax.random.normal(key, (N, C, H, W), dtype=jnp.float32)

    # Deterministic, non-trivial affine parameters (shapes per nn.GroupNorm(2, 6)).
    gamma = 0.5 + 0.1 * jnp.arange(C, dtype=jnp.float32)
    beta = 0.05 * jnp.arange(C, dtype=jnp.float32)

    out = group_norm(x, gamma, beta, num_groups=2, eps=1e-5)
    out = jax.block_until_ready(out)

    ref = _reference_group_norm(x, gamma, beta, num_groups=2, eps=1e-5)
    assert out.shape == (N, C, H, W)
    assert jnp.allclose(out, ref, atol=1e-5, rtol=1e-5), "mismatch vs reference"

    print("KERNEL_OK")
</pallas_src>

<mosaic_0001>
module attributes {stable_mosaic.version = 11 : i64} {
  func.func @kernel(%arg0: memref<4x768xf32, #tpu.memory_space<vmem>>, %arg1: memref<4x768xf32, #tpu.memory_space<vmem>>, %arg2: memref<4x768xf32, #tpu.memory_space<vmem>>, %arg3: memref<4x768xf32, #tpu.memory_space<vmem>>) attributes {dimension_semantics = [], scalar_prefetch = 0 : i64, scratch_operands = 0 : i64, tpu.core_type = #tpu.core_type<tc>} {
    %c0 = arith.constant 0 : index
    %c0_0 = arith.constant 0 : index
    %0 = vector.load %arg0[%c0, %c0_0] : memref<4x768xf32, #tpu.memory_space<vmem>>, vector<4x768xf32>
    %cst = arith.constant dense<0.000000e+00> : vector<4xf32>
    %1 = vector.multi_reduction <add>, %0, %cst [1] : vector<4x768xf32> to vector<4xf32>
    %2 = vector.shape_cast %1 : vector<4xf32> to vector<4x1xf32>
    %3 = arith.mulf %0, %0 : vector<4x768xf32>
    %cst_1 = arith.constant dense<0.000000e+00> : vector<4xf32>
    %4 = vector.multi_reduction <add>, %3, %cst_1 [1] : vector<4x768xf32> to vector<4xf32>
    %5 = vector.shape_cast %4 : vector<4xf32> to vector<4x1xf32>
    %cst_2 = arith.constant 0.00130208337 : f32
    %6 = vector.broadcast %cst_2 : f32 to vector<4x1xf32>
    %7 = arith.mulf %2, %6 : vector<4x1xf32>
    %cst_3 = arith.constant 0.00130208337 : f32
    %8 = vector.broadcast %cst_3 : f32 to vector<4x1xf32>
    %9 = arith.mulf %5, %8 : vector<4x1xf32>
    %10 = arith.mulf %7, %7 : vector<4x1xf32>
    %11 = arith.subf %9, %10 : vector<4x1xf32>
    %cst_4 = arith.constant 0.000000e+00 : f32
    %12 = vector.broadcast %cst_4 : f32 to vector<4x1xf32>
    %13 = arith.maximumf %11, %12 : vector<4x1xf32>
    %cst_5 = arith.constant 9.99999974E-6 : f32
    %14 = vector.broadcast %cst_5 : f32 to vector<4x1xf32>
    %15 = arith.addf %13, %14 : vector<4x1xf32>
    %16 = math.rsqrt %15 : vector<4x1xf32>
    %17 = vector.broadcast %7 : vector<4x1xf32> to vector<4x768xf32>
    %18 = arith.subf %0, %17 : vector<4x768xf32>
    %19 = vector.broadcast %16 : vector<4x1xf32> to vector<4x768xf32>
    %20 = arith.mulf %18, %19 : vector<4x768xf32>
    %c0_6 = arith.constant 0 : index
    %c0_7 = arith.constant 0 : index
    %21 = vector.load %arg1[%c0_6, %c0_7] : memref<4x768xf32, #tpu.memory_space<vmem>>, vector<4x768xf32>
    %22 = arith.mulf %20, %21 : vector<4x768xf32>
    %c0_8 = arith.constant 0 : index
    %c0_9 = arith.constant 0 : index
    %23 = vector.load %arg2[%c0_8, %c0_9] : memref<4x768xf32, #tpu.memory_space<vmem>>, vector<4x768xf32>
    %24 = arith.addf %22, %23 : vector<4x768xf32>
    %c0_10 = arith.constant 0 : index
    %c0_11 = arith.constant 0 : index
    %25 = vector.load %arg3[%c0_10, %c0_11] : memref<4x768xf32, #tpu.memory_space<vmem>>, vector<4x768xf32>
    tpu.vector_store %arg3[%c0_10, %c0_11], %24 {strides = array<i32>} : memref<4x768xf32, #tpu.memory_space<vmem>>, vector<4x768xf32>,
    return
  }
}

</mosaic_0001>

<llo_original>
// kernel: tpu_custom_call.1
$region0: #{tpu_custom_call.1}
  #allocation0 [shape = 'u32[]', space=smem, size = 0x4, offset = 0x4, fixed_abs, tag = 'smem constant byte address 0x4 - core index']
  #allocation1 [shape = 'u32[144,128]{1,0:T(1,128)}', space=vmem, size = 0x12000, scoped, tag = 'internal scratch']
  %s0 = inlined_call_operand.hbm [shape: f32[4,768], index: 0, kind: input, shape index: {}]
  %s1 = inlined_call_operand.hbm [shape: f32[4,768], index: 1, kind: input, shape index: {}]
  %s2 = inlined_call_operand.hbm [shape: f32[4,768], index: 2, kind: input, shape index: {}]
  %s3 = inlined_call_operand.hbm [shape: f32[4,768], index: 3, kind: output, shape index: {}]
  %s4 = sld [smem:[#allocation0]]
  $region34: #{tpu_custom_call.1} parent=0
    _
  %s6 = ssub.s32 1, %s4
  %s7 = scalar_select 0, %s6, %s4
  $region1: #{tpu_custom_call.1} parent=0
    #allocation2 [shape = 'u8[12288]{0}', space=vmem, size = 0x3000, scoped, tag = 'input window, operand 0, single buffered']
    #allocation3 [shape = 's32[1]{0}', space=sflag, size = 0x4, scoped, tag = 'scoped memory for tpu_custom_call.1']
    #allocation4 [shape = 's32[1]{0}', space=sflag, size = 0x4, scoped, tag = 'scoped memory for tpu_custom_call.1']
    #allocation5 [shape = 'u8[12288]{0}', space=vmem, size = 0x3000, scoped, tag = 'input window, operand 1, single buffered']
    #allocation6 [shape = 's32[1]{0}', space=sflag, size = 0x4, scoped, tag = 'scoped memory for tpu_custom_call.1']
    #allocation7 [shape = 'u8[12288]{0}', space=vmem, size = 0x3000, scoped, tag = 'input window, operand 2, single buffered']
    #allocation8 [shape = 'u8[12288]{0}', space=vmem, size = 0x3000, scoped, tag = 'output window, operand 0, single buffered']
    %8 = vsyncpa [#allocation3], 0
    %9 = vsyncpa [#allocation6], 0
    %10 = vsyncpa [#allocation4], 0
    // Predicated region
    $region2: #{tpu_custom_call.1} parent=1 // pred_check
      _
    $region3: #{tpu_custom_call.1} parent=1 // pred_check_branch
      %12 = sbr.rel (0) target = $region5
    $region4: #{tpu_custom_call.1} parent=1 // pred_region
      %s14 = ssub.s32 384, 384
      %15 = vsyncadd [#allocation3], %s14
      %s17 = sshll.u32 [#allocation2], 4
      %s18 = int_to_ptr.vmem [resolvable:$true] %s17
      %20 = dma.hbm_to_vmem [thread:$0]  %s0, 384, %s18, [#allocation3]
    $region5: #{tpu_custom_call.1} parent=1 // pred_fallthru
      _
    // Predicated region
    $region6: #{tpu_custom_call.1} parent=1 // pred_check
      _
    $region7: #{tpu_custom_call.1} parent=1 // pred_check_branch
      %22 = sbr.rel (0) target = $region9
    $region8: #{tpu_custom_call.1} parent=1 // pred_region
      %s24 = ssub.s32 384, 384
      %25 = vsyncadd [#allocation6], %s24
      %s27 = sshll.u32 [#allocation5], 4
      %s28 = int_to_ptr.vmem [resolvable:$true] %s27
      %30 = dma.hbm_to_vmem [thread:$0]  %s1, 384, %s28, [#allocation6]
    $region9: #{tpu_custom_call.1} parent=1 // pred_fallthru
      _
    // Predicated region
    $region10: #{tpu_custom_call.1} parent=1 // pred_check
      _
    $region11: #{tpu_custom_call.1} parent=1 // pred_check_branch
      %32 = sbr.rel (0) target = $region13
    $region12: #{tpu_custom_call.1} parent=1 // pred_region
      %s34 = ssub.s32 384, 384
      %35 = vsyncadd [#allocation6], %s34
      %s37 = sshll.u32 [#allocation7], 4
      %s38 = int_to_ptr.vmem [resolvable:$true] %s37
      %40 = dma.hbm_to_vmem [thread:$0]  %s2, 384, %s38, [#allocation6]
    $region13: #{tpu_custom_call.1} parent=1 // pred_fallthru
      _
    // Predicated region
    $region14: #{tpu_custom_call.1} parent=1 // pred_check
      _
    $region15: #{tpu_custom_call.1} parent=1 // pred_check_branch
      %42 = sbr.rel (0) target = $region17
    $region16: #{tpu_custom_call.1} parent=1 // pred_region
      %43 = dma.done [#allocation3], 384
    $region17: #{tpu_custom_call.1} parent=1 // pred_fallthru
      _
    // Predicated region
    $region18: #{tpu_custom_call.1} parent=1 // pred_check
      _
    $region19: #{tpu_custom_call.1} parent=1 // pred_check_branch
      %45 = sbr.rel (0) target = $region21
    $region20: #{tpu_custom_call.1} parent=1 // pred_region
      %46 = dma.done [#allocation6], 384
    $region21: #{tpu_custom_call.1} parent=1 // pred_fallthru
      _
    // Predicated region
    $region22: #{tpu_custom_call.1} parent=1 // pred_check
      _
    $region23: #{tpu_custom_call.1} parent=1 // pred_check_branch
      %48 = sbr.rel (0) target = $region25
    $region24: #{tpu_custom_call.1} parent=1 // pred_region
      %49 = dma.done [#allocation6], 384
    $region25: #{tpu_custom_call.1} parent=1 // pred_fallthru
      _
    %v50 = vld [vmem:[#allocation2] sm:$0xff]
    %v51 = vld [vmem:[#allocation2 + $0x8] sm:$0xff]
    %v52 = vld [vmem:[#allocation2 + $0x10] sm:$0xff]
    %v56 = vcombine.high %v50, %v50
    %v57 = vcombine.high %v51, %v51
    %v58 = vcombine.high %v52, %v52
    %vm62 = vcmask 1043456
    %v63 = vsel %vm62, %v50, 0.0
    %v64 = vsel %vm62, %v56, 0.0
    %v65 = vadd.f32 %v63, %v64
    %v66 = vsel %vm62, %v51, 0.0
    %v67 = vadd.f32 %v65, %v66
    %v68 = vsel %vm62, %v57, 0.0
    %v69 = vadd.f32 %v67, %v68
    %v70 = vsel %vm62, %v52, 0.0
    %v71 = vadd.f32 %v69, %v70
    %v72 = vsel %vm62, %v58, 0.0
    %v73 = vadd.f32 %v71, %v72
    %74 = vadd.xlane.f32.xlu0 %v73
    %v75 = vpop.xlane.xlu0 %74
    %v76 = vmul.f32 %v50, %v50
    %v77 = vmul.f32 %v51, %v51
    %v78 = vmul.f32 %v52, %v52
    %v82 = vcombine.high %v76, %v76
    %v83 = vcombine.high %v77, %v77
    %v84 = vcombine.high %v78, %v78
    %v88 = vsel %vm62, %v76, 0.0
    %v89 = vsel %vm62, %v82, 0.0
    %v90 = vadd.f32 %v88, %v89
    %v91 = vsel %vm62, %v77, 0.0
    %v92 = vadd.f32 %v90, %v91
    %v93 = vsel %vm62, %v83, 0.0
    %v94 = vadd.f32 %v92, %v93
    %v95 = vsel %vm62, %v78, 0.0
    %v96 = vadd.f32 %v94, %v95
    %v97 = vsel %vm62, %v84, 0.0
    %v98 = vadd.f32 %v96, %v97
    %99 = vadd.xlane.f32.xlu0 %v98
    %v100 = vpop.xlane.xlu0 %99
    %v101 = vmul.f32 %v75, 0.0013020834
    %v102 = vmul.f32 %v100, 0.0013020834
    %v103 = vmul.f32 %v101, %v101
    %v104 = vsub.f32 %v102, %v103
    %v105 = vmax.f32 %v104, 0.0
    %v106 = vadd.f32 %v105, 1e-05
    %v107 = vrsqrt.pop %v106
    %v110 = vunpack.c.l.s4 839922192
    %v111 = vunpack.c.0.s8 %v110
    %v112 = vlaneseq
    %v113 = vshrl.u32 %v112, 7
    %v114 = vsub.s32 %v111, %v113
    %v115 = vrot.slane %v101, %v114
    %v117 = vsub.f32 %v50, %v115
    %v118 = vsub.f32 %v51, %v115
    %v119 = vsub.f32 %v52, %v115
    %v122 = vunpack.c.l.s4 839922192
    %v123 = vunpack.c.0.s8 %v122
    %v124 = vlaneseq
    %v125 = vshrl.u32 %v124, 7
    %v126 = vsub.s32 %v123, %v125
    %v127 = vrot.slane %v107, %v126
    %v129 = vmul.f32 %v117, %v127
    %v130 = vmul.f32 %v118, %v127
    %v131 = vmul.f32 %v119, %v127
    %v132 = vld [vmem:[#allocation5] sm:$0xff]
    %v133 = vld [vmem:[#allocation5 + $0x8] sm:$0xff]
    %v134 = vld [vmem:[#allocation5 + $0x10] sm:$0xff]
    %v135 = vmul.f32 %v129, %v132
    %v136 = vmul.f32 %v130, %v133
    %v137 = vmul.f32 %v131, %v134
    %v138 = vld [vmem:[#allocation7] sm:$0xff]
    %v139 = vld [vmem:[#allocation7 + $0x8] sm:$0xff]
    %v140 = vld [vmem:[#allocation7 + $0x10] sm:$0xff]
    %v141 = vadd.f32 %v135, %v138
    %v142 = vadd.f32 %v136, %v139
    %v143 = vadd.f32 %v137, %v140
    %144 = vst [vmem:[#allocation8] sm:$0xff] %v141
    %145 = vst [vmem:[#allocation8 + $0x8] sm:$0xff] %v142
    %146 = vst [vmem:[#allocation8 + $0x10] sm:$0xff] %v143
    // Predicated region
    $region26: #{tpu_custom_call.1} parent=1 // pred_check
      _
    $region27: #{tpu_custom_call.1} parent=1 // pred_check_branch
      %148 = sbr.rel (0) target = $region29
    $region28: #{tpu_custom_call.1} parent=1 // pred_region
      %s150 = ssub.s32 384, 384
      %151 = vsyncadd [#allocation4], %s150
      %s153 = sshll.u32 [#allocation8], 4
      %s154 = int_to_ptr.vmem [resolvable:$true] %s153
      %156 = dma.vmem_to_hbm [thread:$0]  %s154, 384, %s3, [#allocation4]
    $region29: #{tpu_custom_call.1} parent=1 // pred_fallthru
      _
    // Predicated region
    $region30: #{tpu_custom_call.1} parent=1 // pred_check
      _
    $region31: #{tpu_custom_call.1} parent=1 // pred_check_branch
      %158 = sbr.rel (0) target = $region33
    $region32: #{tpu_custom_call.1} parent=1 // pred_region
      %159 = dma.done [#allocation4], 384
    $region33: #{tpu_custom_call.1} parent=1 // pred_fallthru
      _
    %160 = vsyncpa [#allocation3], 1
    %161 = vsyncpa [#allocation6], 1
    %162 = vsyncpa [#allocation4], 1

</llo_original>
